<compile_context>
chip_gen: v7x
topology: tpu7x:2x2x1
jax: 0.10.0
libtpu: 0.0.40
codegen_flags: <defaults>
</compile_context>

<pallas_src>
import functools

import jax
import jax.numpy as jnp
from jax import lax
from jax.experimental import pallas as pl
from jax.experimental.pallas import tpu as pltpu


def _round_up(x, m):
    return ((x + m - 1) // m) * m


def _aauc_loss_kernel(costh_ref, label_ref, out_ref, acc_ref, *, half_s):
    """One grid step: process a (tb, C) tile of the similarity matrix.

    costh_ref : VMEM (tb, C) float tile of cosine similarities / logits
    label_ref : VMEM (tb, 1) int32 class labels for the tile
    out_ref   : VMEM (1, 1)  per-partition partial tanh-sum (last step only)
    acc_ref   : VMEM (8, C)  folded running sum of tanh terms
    """
    i = pl.program_id(1)  # inner (sequential reduction) axis

    @pl.when(i == 0)
    def _():
        acc_ref[...] = jnp.zeros_like(acc_ref)

    costh = costh_ref[...].astype(jnp.float32)                       # (tb, C)
    labels = label_ref[...]                                          # (tb, 1)

    # Positive logit per row via a one-hot masked row-sum (gather-free).
    col_ids = lax.broadcasted_iota(jnp.int32, costh.shape, 1)        # (tb, C)
    onehot = col_ids == labels
    pos = jnp.sum(jnp.where(onehot, costh, 0.0), axis=1, keepdims=True)

    # tanh form of the sigmoid with the affine deferred to the wrapper.
    # The j == label column is tanh(0) = 0, padded rows are all-zero -> 0,
    # so no masking / select is needed here.
    t = jnp.tanh(half_s * (pos - costh))                             # (tb, C)

    c = costh.shape[1]
    # Fold the tile into the small (8, C) accumulator: sublane-axis split,
    # pure cross-vreg VPU adds (no XLU, no full-tile accumulator traffic).
    acc_ref[...] += t.reshape(-1, 8, c).sum(axis=0)

    @pl.when(i == pl.num_programs(1) - 1)
    def _():
        out_ref[...] = jnp.sum(acc_ref[...], keepdims=True)          # (1, 1)


def aauc_loss(costh, label, *, s=10.0, tb=None, num_partitions=None):
    """Pallas aAUCLoss forward.

    costh : (B, C) float array of cosine similarities (f32 or bf16).
    label : (B,)   int array of class indices in [0, C).
    """
    B, C = costh.shape
    label2d = label.reshape(B, 1).astype(jnp.int32)

    # Batch tile: largest multiple of 8 keeping one costh buffer <= ~8 MiB so
    # 2x double-buffered input + labels + the (8, C) accumulator stays well
    # inside every generation's scoped VMEM (v5e/v6e 128 MiB, v7x 64 MiB).
    bytes_per_row = C * 4
    cap_rows = max(8, ((8 * 1024 * 1024) // bytes_per_row) // 8 * 8)
    if tb is None:
        tb = min(cap_rows, _round_up(B, 8))
    else:
        tb = max(8, _round_up(int(tb), 8))

    num_tiles = pl.cdiv(B, tb)
    if num_partitions is None:
        num_partitions = 2 if num_tiles >= 2 else 1   # 2 TCs on v7x
    tiles_per_part = pl.cdiv(num_tiles, num_partitions)
    total_tiles = num_partitions * tiles_per_part
    b_padded = total_tiles * tb

    # Zero-pad ragged batches: zero rows (label 0) contribute exactly tanh(0)=0
    # per column, so the accumulated sum is bit-identical to the unpadded one.
    if b_padded != B:
        costh = jnp.pad(costh, ((0, b_padded - B), (0, 0)))
        label2d = jnp.pad(label2d, ((0, b_padded - B), (0, 0)))

    kernel = functools.partial(_aauc_loss_kernel, half_s=0.5 * float(s))

    cost = pl.CostEstimate(
        flops=6 * b_padded * C,
        transcendentals=b_padded * C,
        bytes_accessed=b_padded * C * costh.dtype.itemsize
        + b_padded * 4
        + num_partitions * 4,
    )

    partials = pl.pallas_call(
        kernel,
        out_shape=jax.ShapeDtypeStruct((num_partitions, 1), jnp.float32),
        grid_spec=pltpu.PrefetchScalarGridSpec(
            num_scalar_prefetch=0,
            grid=(num_partitions, tiles_per_part),
            in_specs=[
                pl.BlockSpec((tb, C), lambda p, i: (p * tiles_per_part + i, 0)),
                pl.BlockSpec((tb, 1), lambda p, i: (p * tiles_per_part + i, 0)),
            ],
            out_specs=pl.BlockSpec((1, 1), lambda p, i: (p, 0)),
            scratch_shapes=[pltpu.VMEM((8, C), jnp.float32)],
        ),
        compiler_params=pltpu.CompilerParams(
            dimension_semantics=("parallel", "arbitrary"),
            vmem_limit_bytes=32 * 1024 * 1024,   # safe on v5e/v6e/v7x
        ),
        cost_estimate=cost,
    )(costh, label2d)

    # sigmoid(x) = 0.5 + 0.5*tanh(x/2); the j == label column added exactly 0
    # to the tanh sum, so the mean over the B*(C-1) real (i, j != label_i)
    # terms uses the TRUE (unpadded) B and C.
    t_sum = jnp.sum(partials)
    return 0.5 + 0.5 * t_sum / jnp.float32(B * (C - 1))


if __name__ == "__main__":
    key = jax.random.PRNGKey(0)
    s = 10.0

    def reference(costh, label, s):
        # pure-JAX reference, mirroring the PyTorch gather/scatter formulation
        B, C = costh.shape
        pos = costh[jnp.arange(B), label][:, None]
        neg_mask = jnp.arange(C)[None, :] != label[:, None]
        sig = 1.0 / (1.0 + jnp.exp(-s * (pos - costh)))
        return jnp.sum(jnp.where(neg_mask, sig, 0.0)) / (B * (C - 1))

    # Case 1: small single-tile / single-partition path.
    B, C = 16, 32
    k1, k2, k3 = jax.random.split(key, 3)
    costh = jnp.tanh(jax.random.normal(k1, (B, C), dtype=jnp.float32))
    label = jax.random.randint(k2, (B,), 0, C, dtype=jnp.int32)
    loss = jax.block_until_ready(aauc_loss(costh, label, s=s))
    ref = reference(costh, label, s)
    assert jnp.allclose(loss, ref, rtol=1e-4, atol=1e-5), (loss, ref)

    # Case 2: forced small tile -> 2-partition parallel grid, plus a ragged
    # batch exercising the zero-pad path.
    B2 = 13
    costh2 = jnp.tanh(jax.random.normal(k3, (B2, C), dtype=jnp.float32))
    label2 = jax.random.randint(k2, (B2,), 0, C, dtype=jnp.int32)
    loss2 = jax.block_until_ready(aauc_loss(costh2, label2, s=s, tb=8))
    ref2 = reference(costh2, label2, s)
    assert jnp.allclose(loss2, ref2, rtol=1e-4, atol=1e-5), (loss2, ref2)

    print("KERNEL_OK")
</pallas_src>

<mosaic_0001>
module attributes {stable_mosaic.version = 11 : i64} {
  func.func @_aauc_loss_kernel(%arg0: i32, %arg1: i32, %arg2: memref<16x32xf32, #tpu.memory_space<vmem>>, %arg3: memref<16x1xi32, #tpu.memory_space<vmem>>, %arg4: memref<1x1xf32, #tpu.memory_space<vmem>>, %arg5: memref<8x32xf32, #tpu.memory_space<vmem>>) attributes {dimension_semantics = [#tpu.dimension_semantics<parallel>, #tpu.dimension_semantics<arbitrary>], iteration_bounds = array<i64: 1, 1>, scalar_prefetch = 0 : i64, scratch_operands = 1 : i64, tpu.core_type = #tpu.core_type<tc>, window_params = [{transform_indices = @transform_0, window_bounds = array<i64: 16, 32>}, {transform_indices = @transform_1, window_bounds = array<i64: 16, 1>}, {transform_indices = @transform_2, window_bounds = array<i64: 1, 1>}]} {
    %c0_i32 = arith.constant 0 : i32
    %0 = arith.cmpi eq, %arg1, %c0_i32 : i32
    %1 = arith.extui %0 : i1 to i32
    %c0_i32_0 = arith.constant 0 : i32
    %2 = arith.cmpi ne, %1, %c0_i32_0 : i32
    scf.if %2 {
      %cst_13 = arith.constant 0.000000e+00 : f32
      %25 = vector.broadcast %cst_13 : f32 to vector<8x32xf32>
      %c0_14 = arith.constant 0 : index
      %c0_15 = arith.constant 0 : index
      %26 = vector.load %arg5[%c0_14, %c0_15] : memref<8x32xf32, #tpu.memory_space<vmem>>, vector<8x32xf32>
      tpu.vector_store %arg5[%c0_14, %c0_15], %25 {strides = array<i32>} : memref<8x32xf32, #tpu.memory_space<vmem>>, vector<8x32xf32>,
    } else {
    }
    %c0 = arith.constant 0 : index
    %c0_1 = arith.constant 0 : index
    %3 = vector.load %arg2[%c0, %c0_1] : memref<16x32xf32, #tpu.memory_space<vmem>>, vector<16x32xf32>
    %c0_2 = arith.constant 0 : index
    %c0_3 = arith.constant 0 : index
    %4 = vector.load %arg3[%c0_2, %c0_3] : memref<16x1xi32, #tpu.memory_space<vmem>>, vector<16x1xi32>
    %5 = tpu.iota {dimensions = array<i32: 1>} : vector<16x32xi32>
    %6 = vector.broadcast %4 : vector<16x1xi32> to vector<16x32xi32>
    %7 = arith.cmpi eq, %5, %6 : vector<16x32xi32>
    %cst = arith.constant 0.000000e+00 : f32
    %8 = vector.broadcast %cst : f32 to vector<16x32xf32>
    %9 = arith.select %7, %3, %8 : vector<16x32xi1>, vector<16x32xf32>
    %cst_4 = arith.constant dense<0.000000e+00> : vector<16xf32>
    %10 = vector.multi_reduction <add>, %9, %cst_4 [1] : vector<16x32xf32> to vector<16xf32>
    %11 = vector.shape_cast %10 : vector<16xf32> to vector<16x1xf32>
    %12 = vector.broadcast %11 : vector<16x1xf32> to vector<16x32xf32>
    %13 = arith.subf %12, %3 : vector<16x32xf32>
    %cst_5 = arith.constant 5.000000e+00 : f32
    %14 = vector.broadcast %cst_5 : f32 to vector<16x32xf32>
    %15 = arith.mulf %14, %13 : vector<16x32xf32>
    %16 = math.tanh %15 : vector<16x32xf32>
    %c0_6 = arith.constant 0 : index
    %c0_7 = arith.constant 0 : index
    %17 = vector.load %arg5[%c0_6, %c0_7] : memref<8x32xf32, #tpu.memory_space<vmem>>, vector<8x32xf32>
    %18 = vector.shape_cast %16 : vector<16x32xf32> to vector<2x8x32xf32>
    %cst_8 = arith.constant dense<0.000000e+00> : vector<8x32xf32>
    %19 = vector.multi_reduction <add>, %18, %cst_8 [0] : vector<2x8x32xf32> to vector<8x32xf32>
    %20 = arith.addf %17, %19 : vector<8x32xf32>
    %c0_9 = arith.constant 0 : index
    %c0_10 = arith.constant 0 : index
    %21 = vector.load %arg5[%c0_9, %c0_10] : memref<8x32xf32, #tpu.memory_space<vmem>>, vector<8x32xf32>
    tpu.vector_store %arg5[%c0_9, %c0_10], %20 {strides = array<i32>} : memref<8x32xf32, #tpu.memory_space<vmem>>, vector<8x32xf32>,
    %c0_i32_11 = arith.constant 0 : i32
    %22 = arith.cmpi eq, %arg1, %c0_i32_11 : i32
    %23 = arith.extui %22 : i1 to i32
    %c0_i32_12 = arith.constant 0 : i32
    %24 = arith.cmpi ne, %23, %c0_i32_12 : i32
    scf.if %24 {
      %c0_13 = arith.constant 0 : index
      %c0_14 = arith.constant 0 : index
      %25 = vector.load %arg5[%c0_13, %c0_14] : memref<8x32xf32, #tpu.memory_space<vmem>>, vector<8x32xf32>
      %26 = vector.shape_cast %25 : vector<8x32xf32> to vector<1x8x32xf32>
      %cst_15 = arith.constant dense<0.000000e+00> : vector<1xf32>
      %27 = vector.multi_reduction <add>, %26, %cst_15 [1, 2] : vector<1x8x32xf32> to vector<1xf32>
      %28 = vector.shape_cast %27 : vector<1xf32> to vector<1x1x1xf32>
      %29 = vector.extract %28[0, 0, 0] : f32 from vector<1x1x1xf32>
      %30 = vector.broadcast %29 : f32 to vector<1x1xf32>
      %c0_16 = arith.constant 0 : index
      %c0_17 = arith.constant 0 : index
      %31 = vector.load %arg4[%c0_16, %c0_17] : memref<1x1xf32, #tpu.memory_space<vmem>>, vector<1x1xf32>
      tpu.vector_store %arg4[%c0_16, %c0_17], %30 {strides = array<i32>} : memref<1x1xf32, #tpu.memory_space<vmem>>, vector<1x1xf32>,
    } else {
    }
    return
  }
  func.func @transform_0(%arg0: i32, %arg1: i32) -> (i32, i32) {
    %c1_i32 = arith.constant 1 : i32
    %0 = arith.muli %arg0, %c1_i32 : i32
    %1 = arith.addi %0, %arg1 : i32
    %c0_i32 = arith.constant 0 : i32
    %c0_i32_0 = arith.constant 0 : i32
    return %1, %c0_i32 : i32, i32
  }
  func.func @transform_1(%arg0: i32, %arg1: i32) -> (i32, i32) {
    %c1_i32 = arith.constant 1 : i32
    %0 = arith.muli %arg0, %c1_i32 : i32
    %1 = arith.addi %0, %arg1 : i32
    %c0_i32 = arith.constant 0 : i32
    %c0_i32_0 = arith.constant 0 : i32
    return %1, %c0_i32 : i32, i32
  }
  func.func @transform_2(%arg0: i32, %arg1: i32) -> (i32, i32) {
    %c0_i32 = arith.constant 0 : i32
    %c0_i32_0 = arith.constant 0 : i32
    return %arg0, %c0_i32 : i32, i32
  }
}

</mosaic_0001>

<llo_original>
// kernel: tpu_custom_call.1
$region0: #{tpu_custom_call.1}
  #allocation0 [shape = 'u32[]', space=smem, size = 0x4, offset = 0x4, fixed_abs, tag = 'smem constant byte address 0x4 - core index']
  #allocation1 [shape = 'u32[144,128]{1,0:T(1,128)}', space=vmem, size = 0x12000, scoped, tag = 'internal scratch']
  #allocation2 [shape = 'f32[8,32]{1,0:T(8,128)}', space=vmem, size = 0x1000, scoped, tag = 'scratch operand']
  %s0 = inlined_call_operand.vmem [shape: f32[16,32], index: 0, kind: input, shape index: {}]
  %s1 = inlined_call_operand.vmem [shape: s32[16,1], index: 1, kind: input, shape index: {}]
  %s2 = inlined_call_operand.hbm [shape: f32[1,1], index: 2, kind: output, shape index: {}]
  %s3 = sld [smem:[#allocation0]]
  $region26: #{tpu_custom_call.1} parent=0
    _
  %s5 = ssub.s32 1, %s3
  %s6 = scalar_select 0, %s5, %s3
  $region1: #{tpu_custom_call.1} parent=0
    #allocation3 [shape = 'u8[512]{0}', space=vmem, size = 0x400, scoped, tag = 'output window, operand 0, single buffered']
    #allocation4 [shape = 's32[1]{0}', space=sflag, size = 0x4, scoped, tag = 'scoped memory for tpu_custom_call.1']
    %7 = vsyncpa [#allocation4], 0
    // Predicated region
    $region2: #{tpu_custom_call.1} parent=1 // pred_check
      _
    $region3: #{tpu_custom_call.1} parent=1 // pred_check_branch
      %9 = sbr.rel (0) target = $region5
    $region4: #{tpu_custom_call.1} parent=1 // pred_region
      %s10 = sadd.s32 0, 0
      %s11 = smul.u32 2, %s10
      %p12 = scmp.lt.s32.totalorder %s11, 1
      %s13 = scalar_select %p12, %s11, 1
      %s14 = smul.addr %s13, 8
      %s15 = scalar_lea.vmem %s0, %s14
      %s16 = sadd.s32 0, 0
      %s17 = smul.u32 2, %s16
    $region5: #{tpu_custom_call.1} parent=1 // pred_fallthru
      _
    // Predicated region
    $region6: #{tpu_custom_call.1} parent=1 // pred_check
      _
    $region7: #{tpu_custom_call.1} parent=1 // pred_check_branch
      %19 = sbr.rel (0) target = $region9
    $region8: #{tpu_custom_call.1} parent=1 // pred_region
      %s20 = sadd.s32 0, 0
      %s21 = smul.u32 2, %s20
      %p22 = scmp.lt.s32.totalorder %s21, 1
      %s23 = scalar_select %p22, %s21, 1
      %s24 = smul.addr %s23, 8
      %s25 = scalar_lea.vmem %s1, %s24
      %s26 = sadd.s32 0, 0
      %s27 = smul.u32 2, %s26
    $region9: #{tpu_custom_call.1} parent=1 // pred_fallthru
      _
    %s28 = sadd.s32 0, 0
    %s29 = smul.u32 2, %s28
    %p30 = scmp.lt.s32.totalorder %s29, 1
    %s31 = scalar_select %p30, %s29, 1
    %s32 = smul.addr %s31, 8
    %s33 = scalar_lea.vmem %s0, %s32
    %s34 = sadd.s32 0, 0
    %s35 = smul.u32 2, %s34
    %p36 = scmp.lt.s32.totalorder %s35, 1
    %s37 = scalar_select %p36, %s35, 1
    %s38 = smul.addr %s37, 8
    %s39 = scalar_lea.vmem %s1, %s38
    %s40 = sadd.s32 0, 0
    %s41 = smul.u32 2, %s40
    %p42 = scmp.lt.s32.totalorder %s41, 1
    %s43 = scalar_select %p42, %s41, 1
    %s44 = smul.addr %s43, 8
    %s45 = scalar_lea.vmem %s0, %s44
    %s46 = sadd.s32 0, 0
    %s47 = smul.u32 2, %s46
    %s48 = sadd.s32 0, 0
    %s49 = smul.u32 2, %s48
    %p50 = scmp.lt.s32.totalorder %s49, 1
    %s51 = scalar_select %p50, %s49, 1
    %s52 = smul.addr %s51, 8
    %s53 = scalar_lea.vmem %s1, %s52
    %s54 = sadd.s32 0, 0
    %s55 = smul.u32 2, %s54
    %p56 = scmp.eq.s32.totalorder 0, 0
    // Predicated region
    $region10: #{tpu_custom_call.1} parent=1 // pred_check
      %p57 = pneg %p56
    $region11: #{tpu_custom_call.1} parent=1 // pred_check_branch
      %59 = sbr.rel (%p57) target = $region13
    $region12: #{tpu_custom_call.1} parent=1 // pred_region
      %vm60 = vcmask 261120
      %61 = vst.msk [vmem:[#allocation2] sm:$0xff] %vm60, 0.0
    $region13: #{tpu_custom_call.1} parent=1 // pred_fallthru
      _
    %v62 = vld [vmem:[%s45] sm:$0xff]
    %v63 = vld [vmem:[%s45 + $0x8] sm:$0xff]
    %v64 = vld [vmem:[%s53] sm:$0xff]
    %v65 = vld [vmem:[%s53 + $0x8] sm:$0xff]
    %v66 = vlaneseq
    %v67 = vand.u32 %v66, 127
    %68 = vset.pattern.permute.xlu0 0
    %69 = vperm.xlu0 %68, %v64
    %v70 = vpop.permute.xlu0 %69
    %71 = vset.pattern.permute.xlu0 0
    %72 = vperm.xlu0 %71, %v65
    %v73 = vpop.permute.xlu0 %72
    %vm74 = vcmp.eq.s32.totalorder %v67, %v70
    %vm75 = vcmp.eq.s32.totalorder %v67, %v73
    %v76 = vsel %vm74, %v62, 0.0
    %v77 = vsel %vm75, %v63, 0.0
    %vm78 = vcmask 261120
    %v79 = vsel %vm78, %v76, 0.0
    %80 = vadd.xlane.f32.xlu0 %v79
    %v81 = vpop.xlane.xlu0 %80
    %v82 = vsel %vm78, %v77, 0.0
    %83 = vadd.xlane.f32.xlu0 %v82
    %v84 = vpop.xlane.xlu0 %83
    %v85 = vsub.f32 %v81, %v62
    %v86 = vsub.f32 %v84, %v63
    %v87 = vmul.f32 %v85, 5.0
    %v88 = vmul.f32 %v86, 5.0
    %v89 = vtanh.pop %v87
    %v90 = vtanh.pop %v88
    %v91 = vld [vmem:[#allocation2] sm:$0xff]
    %v92 = vsel %vm78, %v89, 0.0
    %v93 = vsel %vm78, %v90, 0.0
    %v94 = vadd.f32 %v92, %v93
    %v95 = vadd.f32 %v91, %v94
    %96 = vst.msk [vmem:[#allocation2] sm:$0xff] %vm78, %v95
    // Predicated region
    $region14: #{tpu_custom_call.1} parent=1 // pred_check
      %p97 = pneg %p56
    $region15: #{tpu_custom_call.1} parent=1 // pred_check_branch
      %99 = sbr.rel (%p97) target = $region17
    $region16: #{tpu_custom_call.1} parent=1 // pred_region
      %v100 = vld [vmem:[#allocation2] sm:$0xff]
      %v101 = vsel %vm78, %v100, 0.0
      %102 = vadd.xlane.f32.xlu0 %v101
      %v103 = vpop.xlane.xlu0 %102
      %v104 = vrot.slane %v103, 4
      %v105 = vadd.f32 %v103, %v104
      %v106 = vrot.slane %v105, 2
      %v107 = vadd.f32 %v105, %v106
      %v108 = vrot.slane %v107, 1
      %v109 = vadd.f32 %v107, %v108
      %s110 = vtos %v109
      %v111 = vstv %s110
      %vm112 = vcmask 0
      %113 = vst.msk [vmem:[#allocation3] sm:$0x1] %vm112, %v111
    $region17: #{tpu_custom_call.1} parent=1 // pred_fallthru
      _
    // Predicated region
    $region18: #{tpu_custom_call.1} parent=1 // pred_check
      _
    $region19: #{tpu_custom_call.1} parent=1 // pred_check_branch
      %115 = sbr.rel (0) target = $region21
    $region20: #{tpu_custom_call.1} parent=1 // pred_region
      %s117 = ssub.s32 16, 16
      %118 = vsyncadd [#allocation4], %s117
      %s120 = sshll.u32 [#allocation3], 4
      %s121 = int_to_ptr.vmem [resolvable:$true] %s120
      %123 = dma.vmem_to_hbm [thread:$0]  %s121, 16, %s2, [#allocation4]
    $region21: #{tpu_custom_call.1} parent=1 // pred_fallthru
      _
    // Predicated region
    $region22: #{tpu_custom_call.1} parent=1 // pred_check
      _
    $region23: #{tpu_custom_call.1} parent=1 // pred_check_branch
      %125 = sbr.rel (0) target = $region25
    $region24: #{tpu_custom_call.1} parent=1 // pred_region
      %126 = dma.done [#allocation4], 16
    $region25: #{tpu_custom_call.1} parent=1 // pred_fallthru
      _
    %127 = vsyncpa [#allocation4], 1

</llo_original>
